<compile_context>
chip_gen: v6e
topology: v6e:2x2x1
jax: 0.10.0
libtpu: 0.0.40
codegen_flags: <defaults>
</compile_context>

<pallas_src>
import functools

import jax
import jax.numpy as jnp
from jax.experimental import pallas as pl
from jax.experimental.pallas import tpu as pltpu


def _round_up(n, m):
    return ((n + m - 1) // m) * m


def _cdiv(a, b):
    return (a + b - 1) // b


# ---------------------------------------------------------------------------
# Pallas kernel: fused dueling-DQN forward (4 matmuls, one narrow store)
# ---------------------------------------------------------------------------
def dueling_dqn_kernel(x_ref,
                       w1_ref, b1_ref,
                       w2_ref, b2_ref,
                       wav_ref, bav_ref,
                       wh_ref, bh_ref,
                       o_ref):
    cdtype = w1_ref.dtype  # compute dtype for MXU operands (f32 or bf16)

    x = x_ref[...]

    # h1 = relu(x @ W1 + b1)        (bias + accumulation always f32)
    h1 = jnp.dot(x, w1_ref[...], preferred_element_type=jnp.float32) + b1_ref[...]
    h1 = jnp.maximum(h1, 0.0).astype(cdtype)

    # h2 = relu(h1 @ W2 + b2)
    h2 = jnp.dot(h1, w2_ref[...], preferred_element_type=jnp.float32) + b2_ref[...]
    h2 = jnp.maximum(h2, 0.0).astype(cdtype)

    # packed adv|val streams: relu(h2 @ [Wa|Wv] + [ba|bv])  -> [TB, 2*h2]
    av = jnp.dot(h2, wav_ref[...], preferred_element_type=jnp.float32) + bav_ref[...]
    av = jnp.maximum(av, 0.0).astype(cdtype)

    # Q with the dueling mean/broadcast folded into wh/bh, padded to 8 lanes.
    q = jnp.dot(av, wh_ref[...], preferred_element_type=jnp.float32) + bh_ref[...]
    o_ref[...] = q.astype(o_ref.dtype)


# ---------------------------------------------------------------------------
# Parameter packing (wrapper-side constant folding)
# ---------------------------------------------------------------------------
def pack_params(p, num_actions, compute_dtype=jnp.float32):
    """Fold the dueling head into the weights; pad head to round_up(A, 8) cols.

    Weights are cast to `compute_dtype` (f32 or bf16); biases stay f32 so the
    accumulate/bias path keeps full precision.
    """
    A = num_actions
    a_pad = _round_up(A, 8)  # narrow, contiguous output block (full last dim)

    # M = I_A - (1/A) * ones(A, A): applies (adv2 - mean(adv2)) as a matmul.
    # NOTE: mean uses the true num_actions, not the padded width.
    M = jnp.eye(A, dtype=jnp.float32) - jnp.full((A, A), 1.0 / A, dtype=jnp.float32)

    # Packed adv/val stream weights: one matmul for both streams.
    w_av = jnp.concatenate([p["wa"], p["wv"]], axis=1)            # [h2, 2*h2]
    b_av = jnp.concatenate([p["ba"], p["bv"]], axis=1)            # [1, 2*h2]

    # Folded head: Q = adv @ (wa2 @ M) + val @ (wv2 * 1_A) + (ba2 @ M + bv2 * 1_A)
    wa2_eff = p["wa2"] @ M                                        # [h2, A]
    ba2_eff = p["ba2"] @ M                                        # [1, A]
    wv2_rep = jnp.broadcast_to(p["wv2"], (p["wv2"].shape[0], A))  # [h2, A]
    bv2_rep = jnp.broadcast_to(p["bv2"], (1, A))                  # [1, A]

    w_head = jnp.concatenate([wa2_eff, wv2_rep], axis=0)          # [2*h2, A]
    b_head = ba2_eff + bv2_rep                                    # [1, A]

    # Zero-pad head columns to a_pad so the kernel writes a contiguous block.
    w_head = jnp.pad(w_head, ((0, 0), (0, a_pad - A)))
    b_head = jnp.pad(b_head, ((0, 0), (0, a_pad - A)))

    cd = compute_dtype
    packed = dict(
        w1=p["w1"].astype(cd), b1=p["b1"].astype(jnp.float32),
        w2=p["w2"].astype(cd), b2=p["b2"].astype(jnp.float32),
        w_av=w_av.astype(cd), b_av=b_av.astype(jnp.float32),
        w_head=w_head.astype(cd), b_head=b_head.astype(jnp.float32),
    )
    return packed, a_pad


# ---------------------------------------------------------------------------
# Wrapper: batch-tiled pallas_call (jitted so the final slice fuses)
# ---------------------------------------------------------------------------
@functools.partial(jax.jit,
                   static_argnames=("num_actions", "a_pad", "tb_max",
                                    "min_grid_steps"))
def dueling_dqn_forward(x, packed, num_actions, a_pad, *,
                        tb_max=4096, min_grid_steps=2):
    """x: [B, state_size] float32. Returns [B, num_actions] float32."""
    B, S = x.shape
    cdtype = packed["w1"].dtype

    # Balanced batch tiling:
    #   - at least `min_grid_steps` steps (so v7x shards across both TCs),
    #     but never more steps than 8-row strips,
    #   - at most ~tb_max rows per step,
    #   - TB a multiple of 8 (sublane constraint), minimal dead padding.
    min_steps = max(1, min(min_grid_steps, _cdiv(B, 8)))
    n_steps = max(min_steps, _cdiv(B, tb_max))
    TB = _round_up(_cdiv(B, n_steps), 8)
    B_pad = n_steps * TB

    if B_pad != B:
        x = jnp.pad(x, ((0, B_pad - B), (0, 0)))
    x = x.astype(cdtype)   # bf16 input path on v6e/v7x when packed is bf16

    grid = (n_steps,)
    x_spec = pl.BlockSpec((TB, S), lambda i: (i, 0))
    out_spec = pl.BlockSpec((TB, a_pad), lambda i: (i, 0))

    def const_spec(arr):
        # Full-array block, same block every grid step -> weights stay resident.
        return pl.BlockSpec(arr.shape, lambda i: (0,) * arr.ndim)

    operands = (
        x,
        packed["w1"], packed["b1"],
        packed["w2"], packed["b2"],
        packed["w_av"], packed["b_av"],
        packed["w_head"], packed["b_head"],
    )
    in_specs = [x_spec] + [const_spec(a) for a in operands[1:]]

    h1 = packed["w1"].shape[1]
    h2 = packed["w2"].shape[1]
    flops = 2 * B_pad * (S * h1
                         + h1 * h2
                         + h2 * packed["w_av"].shape[1]
                         + packed["w_head"].shape[0] * a_pad)
    bytes_accessed = (x.size * x.dtype.itemsize
                      + sum(int(a.size) * a.dtype.itemsize for a in operands[1:])
                      + B_pad * a_pad * 4)

    out = pl.pallas_call(
        dueling_dqn_kernel,
        out_shape=jax.ShapeDtypeStruct((B_pad, a_pad), jnp.float32),
        grid=grid,
        in_specs=in_specs,
        out_specs=out_spec,
        compiler_params=pltpu.CompilerParams(
            dimension_semantics=("parallel",)),
        cost_estimate=pl.CostEstimate(
            flops=flops, bytes_accessed=bytes_accessed, transcendentals=0),
    )(*operands)

    # Cheap: out is only 8 lanes wide and the slice lives inside this jit.
    return out[:B, :num_actions]


# ---------------------------------------------------------------------------
# Parameter init + pure-JAX reference
# ---------------------------------------------------------------------------
def init_params(key, state_size, num_actions, h1_size=20, h2_size=15):
    """Deterministic synthetic parameters. Weights stored as [in, out]."""
    def linear(key, fan_in, fan_out):
        kw, kb = jax.random.split(key)
        bound = 1.0 / jnp.sqrt(fan_in)
        w = jax.random.uniform(kw, (fan_in, fan_out), jnp.float32, -bound, bound)
        b = jax.random.uniform(kb, (1, fan_out), jnp.float32, -bound, bound)
        return w, b

    ks = jax.random.split(key, 6)
    w1, b1 = linear(ks[0], state_size, h1_size)
    w2, b2 = linear(ks[1], h1_size, h2_size)
    wa, ba = linear(ks[2], h2_size, h2_size)
    wv, bv = linear(ks[3], h2_size, h2_size)
    wa2, ba2 = linear(ks[4], h2_size, num_actions)
    wv2, bv2 = linear(ks[5], h2_size, 1)
    return dict(w1=w1, b1=b1, w2=w2, b2=b2, wa=wa, ba=ba, wv=wv, bv=bv,
                wa2=wa2, ba2=ba2, wv2=wv2, bv2=bv2)


def reference_forward(x, p):
    """Pure-JAX reference replicating the PyTorch forward semantics."""
    h1 = jax.nn.relu(x @ p["w1"] + p["b1"])
    h2 = jax.nn.relu(h1 @ p["w2"] + p["b2"])
    adv = jax.nn.relu(h2 @ p["wa"] + p["ba"])
    val = jax.nn.relu(h2 @ p["wv"] + p["bv"])
    adv2 = adv @ p["wa2"] + p["ba2"]
    val2 = val @ p["wv2"] + p["bv2"]               # [B, 1] -> broadcast
    return val2 + adv2 - jnp.mean(adv2, axis=1, keepdims=True)


if __name__ == "__main__":
    key = jax.random.PRNGKey(0)
    k_x, k_x2, k_p = jax.random.split(key, 3)

    state_size = 16
    num_actions = 4

    params = init_params(k_p, state_size, num_actions)

    # --- f32 path (tight tolerance vs reference) ---------------------------
    packed_f32, a_pad = pack_params(params, num_actions)

    # Small test: batch=2 (single 8-row tile).
    batch = 2
    x = jax.random.normal(k_x, (batch, state_size), dtype=jnp.float32)
    out = jax.block_until_ready(
        dueling_dqn_forward(x, packed_f32, num_actions, a_pad))
    ref = reference_forward(x, params)
    assert out.shape == (batch, num_actions)
    assert jnp.allclose(out, ref, atol=1e-4, rtol=1e-4), "mismatch (B=2, f32)"

    # Multi-step batch grid + batch padding (balanced 3-step tiling).
    batch2 = 130
    x2 = jax.random.normal(k_x2, (batch2, state_size), dtype=jnp.float32)
    out2 = jax.block_until_ready(
        dueling_dqn_forward(x2, packed_f32, num_actions, a_pad, tb_max=64))
    ref2 = reference_forward(x2, params)
    assert out2.shape == (batch2, num_actions)
    assert jnp.allclose(out2, ref2, atol=1e-4, rtol=1e-4), "mismatch (B=130, f32)"

    # --- bf16 compute path (v6e/v7x HBM/vld saver; f32 accumulation) -------
    packed_bf16, _ = pack_params(params, num_actions,
                                 compute_dtype=jnp.bfloat16)
    out3 = jax.block_until_ready(
        dueling_dqn_forward(x2, packed_bf16, num_actions, a_pad))
    assert out3.shape == (batch2, num_actions)
    assert float(jnp.max(jnp.abs(out3 - ref2))) < 1e-1, "mismatch (B=130, bf16)"

    print("KERNEL_OK")
</pallas_src>

<mosaic_0001>
module attributes {stable_mosaic.version = 11 : i64} {
  func.func @dueling_dqn_kernel(%arg0: i32, %arg1: memref<8x16xf32, #tpu.memory_space<vmem>>, %arg2: memref<16x20xf32, #tpu.memory_space<vmem>>, %arg3: memref<1x20xf32, #tpu.memory_space<vmem>>, %arg4: memref<20x15xf32, #tpu.memory_space<vmem>>, %arg5: memref<1x15xf32, #tpu.memory_space<vmem>>, %arg6: memref<15x30xf32, #tpu.memory_space<vmem>>, %arg7: memref<1x30xf32, #tpu.memory_space<vmem>>, %arg8: memref<30x8xf32, #tpu.memory_space<vmem>>, %arg9: memref<1x8xf32, #tpu.memory_space<vmem>>, %arg10: memref<8x8xf32, #tpu.memory_space<vmem>>) attributes {dimension_semantics = [#tpu.dimension_semantics<parallel>], iteration_bounds = array<i64: 1>, scalar_prefetch = 0 : i64, scratch_operands = 0 : i64, tpu.core_type = #tpu.core_type<tc>, window_params = [{transform_indices = @transform_0, window_bounds = array<i64: 8, 16>}, {pipeline_mode = #tpu.pipeline_mode<synchronous>, transform_indices = @transform_1, window_bounds = array<i64: 16, 20>}, {pipeline_mode = #tpu.pipeline_mode<synchronous>, transform_indices = @transform_2, window_bounds = array<i64: 1, 20>}, {pipeline_mode = #tpu.pipeline_mode<synchronous>, transform_indices = @transform_3, window_bounds = array<i64: 20, 15>}, {pipeline_mode = #tpu.pipeline_mode<synchronous>, transform_indices = @transform_4, window_bounds = array<i64: 1, 15>}, {pipeline_mode = #tpu.pipeline_mode<synchronous>, transform_indices = @transform_5, window_bounds = array<i64: 15, 30>}, {pipeline_mode = #tpu.pipeline_mode<synchronous>, transform_indices = @transform_6, window_bounds = array<i64: 1, 30>}, {pipeline_mode = #tpu.pipeline_mode<synchronous>, transform_indices = @transform_7, window_bounds = array<i64: 30, 8>}, {pipeline_mode = #tpu.pipeline_mode<synchronous>, transform_indices = @transform_8, window_bounds = array<i64: 1, 8>}, {transform_indices = @transform_9, window_bounds = array<i64: 8, 8>}]} {
    %c0 = arith.constant 0 : index
    %c0_0 = arith.constant 0 : index
    %0 = vector.load %arg1[%c0, %c0_0] : memref<8x16xf32, #tpu.memory_space<vmem>>, vector<8x16xf32>
    %c0_1 = arith.constant 0 : index
    %c0_2 = arith.constant 0 : index
    %1 = vector.load %arg2[%c0_1, %c0_2] : memref<16x20xf32, #tpu.memory_space<vmem>>, vector<16x20xf32>
    %cst = arith.constant dense<0.000000e+00> : vector<8x20xf32>
    %2 = tpu.matmul %0, %1, %cst {dimension_numbers = #tpu.dot_dimension_numbers<[1], [0], [0], [1], [0, 0, 1, 1], [], []>} : vector<8x16xf32>, vector<16x20xf32>, vector<8x20xf32> -> vector<8x20xf32>
    %c0_3 = arith.constant 0 : index
    %c0_4 = arith.constant 0 : index
    %3 = vector.load %arg3[%c0_3, %c0_4] : memref<1x20xf32, #tpu.memory_space<vmem>>, vector<1x20xf32>
    %4 = vector.broadcast %3 : vector<1x20xf32> to vector<8x20xf32>
    %5 = arith.addf %2, %4 : vector<8x20xf32>
    %cst_5 = arith.constant 0.000000e+00 : f32
    %6 = vector.broadcast %cst_5 : f32 to vector<8x20xf32>
    %7 = arith.maximumf %5, %6 : vector<8x20xf32>
    %c0_6 = arith.constant 0 : index
    %c0_7 = arith.constant 0 : index
    %8 = vector.load %arg4[%c0_6, %c0_7] : memref<20x15xf32, #tpu.memory_space<vmem>>, vector<20x15xf32>
    %cst_8 = arith.constant dense<0.000000e+00> : vector<8x15xf32>
    %9 = tpu.matmul %7, %8, %cst_8 {dimension_numbers = #tpu.dot_dimension_numbers<[1], [0], [0], [1], [0, 0, 1, 1], [], []>} : vector<8x20xf32>, vector<20x15xf32>, vector<8x15xf32> -> vector<8x15xf32>
    %c0_9 = arith.constant 0 : index
    %c0_10 = arith.constant 0 : index
    %10 = vector.load %arg5[%c0_9, %c0_10] : memref<1x15xf32, #tpu.memory_space<vmem>>, vector<1x15xf32>
    %11 = vector.broadcast %10 : vector<1x15xf32> to vector<8x15xf32>
    %12 = arith.addf %9, %11 : vector<8x15xf32>
    %cst_11 = arith.constant 0.000000e+00 : f32
    %13 = vector.broadcast %cst_11 : f32 to vector<8x15xf32>
    %14 = arith.maximumf %12, %13 : vector<8x15xf32>
    %c0_12 = arith.constant 0 : index
    %c0_13 = arith.constant 0 : index
    %15 = vector.load %arg6[%c0_12, %c0_13] : memref<15x30xf32, #tpu.memory_space<vmem>>, vector<15x30xf32>
    %cst_14 = arith.constant dense<0.000000e+00> : vector<8x30xf32>
    %16 = tpu.matmul %14, %15, %cst_14 {dimension_numbers = #tpu.dot_dimension_numbers<[1], [0], [0], [1], [0, 0, 1, 1], [], []>} : vector<8x15xf32>, vector<15x30xf32>, vector<8x30xf32> -> vector<8x30xf32>
    %c0_15 = arith.constant 0 : index
    %c0_16 = arith.constant 0 : index
    %17 = vector.load %arg7[%c0_15, %c0_16] : memref<1x30xf32, #tpu.memory_space<vmem>>, vector<1x30xf32>
    %18 = vector.broadcast %17 : vector<1x30xf32> to vector<8x30xf32>
    %19 = arith.addf %16, %18 : vector<8x30xf32>
    %cst_17 = arith.constant 0.000000e+00 : f32
    %20 = vector.broadcast %cst_17 : f32 to vector<8x30xf32>
    %21 = arith.maximumf %19, %20 : vector<8x30xf32>
    %c0_18 = arith.constant 0 : index
    %c0_19 = arith.constant 0 : index
    %22 = vector.load %arg8[%c0_18, %c0_19] : memref<30x8xf32, #tpu.memory_space<vmem>>, vector<30x8xf32>
    %cst_20 = arith.constant dense<0.000000e+00> : vector<8x8xf32>
    %23 = tpu.matmul %21, %22, %cst_20 {dimension_numbers = #tpu.dot_dimension_numbers<[1], [0], [0], [1], [0, 0, 1, 1], [], []>} : vector<8x30xf32>, vector<30x8xf32>, vector<8x8xf32> -> vector<8x8xf32>
    %c0_21 = arith.constant 0 : index
    %c0_22 = arith.constant 0 : index
    %24 = vector.load %arg9[%c0_21, %c0_22] : memref<1x8xf32, #tpu.memory_space<vmem>>, vector<1x8xf32>
    %25 = vector.broadcast %24 : vector<1x8xf32> to vector<8x8xf32>
    %26 = arith.addf %23, %25 : vector<8x8xf32>
    %c0_23 = arith.constant 0 : index
    %c0_24 = arith.constant 0 : index
    %27 = vector.load %arg10[%c0_23, %c0_24] : memref<8x8xf32, #tpu.memory_space<vmem>>, vector<8x8xf32>
    tpu.vector_store %arg10[%c0_23, %c0_24], %26 {strides = array<i32>} : memref<8x8xf32, #tpu.memory_space<vmem>>, vector<8x8xf32>,
    return
  }
  func.func @transform_0(%arg0: i32) -> (i32, i32) {
    %c0_i32 = arith.constant 0 : i32
    %c0_i32_0 = arith.constant 0 : i32
    return %arg0, %c0_i32 : i32, i32
  }
  func.func @transform_1(%arg0: i32) -> (i32, i32) {
    %c0_i32 = arith.constant 0 : i32
    %c0_i32_0 = arith.constant 0 : i32
    %c0_i32_1 = arith.constant 0 : i32
    return %c0_i32, %c0_i32_0 : i32, i32
  }
  func.func @transform_2(%arg0: i32) -> (i32, i32) {
    %c0_i32 = arith.constant 0 : i32
    %c0_i32_0 = arith.constant 0 : i32
    %c0_i32_1 = arith.constant 0 : i32
    return %c0_i32, %c0_i32_0 : i32, i32
  }
  func.func @transform_3(%arg0: i32) -> (i32, i32) {
    %c0_i32 = arith.constant 0 : i32
    %c0_i32_0 = arith.constant 0 : i32
    %c0_i32_1 = arith.constant 0 : i32
    return %c0_i32, %c0_i32_0 : i32, i32
  }
  func.func @transform_4(%arg0: i32) -> (i32, i32) {
    %c0_i32 = arith.constant 0 : i32
    %c0_i32_0 = arith.constant 0 : i32
    %c0_i32_1 = arith.constant 0 : i32
    return %c0_i32, %c0_i32_0 : i32, i32
  }
  func.func @transform_5(%arg0: i32) -> (i32, i32) {
    %c0_i32 = arith.constant 0 : i32
    %c0_i32_0 = arith.constant 0 : i32
    %c0_i32_1 = arith.constant 0 : i32
    return %c0_i32, %c0_i32_0 : i32, i32
  }
  func.func @transform_6(%arg0: i32) -> (i32, i32) {
    %c0_i32 = arith.constant 0 : i32
    %c0_i32_0 = arith.constant 0 : i32
    %c0_i32_1 = arith.constant 0 : i32
    return %c0_i32, %c0_i32_0 : i32, i32
  }
  func.func @transform_7(%arg0: i32) -> (i32, i32) {
    %c0_i32 = arith.constant 0 : i32
    %c0_i32_0 = arith.constant 0 : i32
    %c0_i32_1 = arith.constant 0 : i32
    return %c0_i32, %c0_i32_0 : i32, i32
  }
  func.func @transform_8(%arg0: i32) -> (i32, i32) {
    %c0_i32 = arith.constant 0 : i32
    %c0_i32_0 = arith.constant 0 : i32
    %c0_i32_1 = arith.constant 0 : i32
    return %c0_i32, %c0_i32_0 : i32, i32
  }
  func.func @transform_9(%arg0: i32) -> (i32, i32) {
    %c0_i32 = arith.constant 0 : i32
    %c0_i32_0 = arith.constant 0 : i32
    return %arg0, %c0_i32 : i32, i32
  }
}

</mosaic_0001>

<llo_original>
// kernel: dueling_dqn_forward.1
$region0: #{dueling_dqn_forward.1}
  #allocation0 [shape = 'u32[]', space=smem, size = 0x4, offset = 0x4, fixed_abs, tag = 'smem constant byte address 0x4 - core index']
  #allocation1 [shape = 'u32[144,128]{1,0:T(1,128)}', space=vmem, size = 0x12000, scoped, tag = 'internal scratch']
  %s0 = inlined_call_operand.vmem [shape: f32[8,16], index: 0, kind: input, shape index: {}]
  %s1 = inlined_call_operand.vmem [shape: f32[16,20], index: 1, kind: input, shape index: {}]
  %s2 = inlined_call_operand.vmem [shape: f32[1,20], index: 2, kind: input, shape index: {}]
  %s3 = inlined_call_operand.vmem [shape: f32[20,15], index: 3, kind: input, shape index: {}]
  %s4 = inlined_call_operand.vmem [shape: f32[1,15], index: 4, kind: input, shape index: {}]
  %s5 = inlined_call_operand.vmem [shape: f32[15,30], index: 5, kind: input, shape index: {}]
  %s6 = inlined_call_operand.vmem [shape: f32[1,30], index: 6, kind: input, shape index: {}]
  %s7 = inlined_call_operand.vmem [shape: f32[30,8], index: 7, kind: input, shape index: {}]
  %s8 = inlined_call_operand.vmem [shape: f32[1,8], index: 8, kind: input, shape index: {}]
  %s9 = inlined_call_operand.vmem [shape: f32[8,8], index: 9, kind: output, shape index: {}]
  %s10 = sld [smem:[#allocation0]]
  $region46: #{dueling_dqn_forward.1} parent=0
    _
  %s12 = ssub.s32 1, %s10
  %s13 = scalar_select 0, %s12, %s10
  // Predicated region
  $region2: #{dueling_dqn_forward.1} parent=0 // pred_check
    _
  $region3: #{dueling_dqn_forward.1} parent=0 // pred_check_branch
    %15 = sbr.rel (0) target = $region5
  $region4: #{dueling_dqn_forward.1} parent=0 // pred_region
    _
  $region5: #{dueling_dqn_forward.1} parent=0 // pred_fallthru
    _
  // Predicated region
  $region6: #{dueling_dqn_forward.1} parent=0 // pred_check
    _
  $region7: #{dueling_dqn_forward.1} parent=0 // pred_check_branch
    %17 = sbr.rel (0) target = $region9
  $region8: #{dueling_dqn_forward.1} parent=0 // pred_region
    _
  $region9: #{dueling_dqn_forward.1} parent=0 // pred_fallthru
    _
  // Predicated region
  $region10: #{dueling_dqn_forward.1} parent=0 // pred_check
    _
  $region11: #{dueling_dqn_forward.1} parent=0 // pred_check_branch
    %19 = sbr.rel (0) target = $region13
  $region12: #{dueling_dqn_forward.1} parent=0 // pred_region
    _
  $region13: #{dueling_dqn_forward.1} parent=0 // pred_fallthru
    _
  // Predicated region
  $region14: #{dueling_dqn_forward.1} parent=0 // pred_check
    _
  $region15: #{dueling_dqn_forward.1} parent=0 // pred_check_branch
    %21 = sbr.rel (0) target = $region17
  $region16: #{dueling_dqn_forward.1} parent=0 // pred_region
    _
  $region17: #{dueling_dqn_forward.1} parent=0 // pred_fallthru
    _
  // Predicated region
  $region18: #{dueling_dqn_forward.1} parent=0 // pred_check
    _
  $region19: #{dueling_dqn_forward.1} parent=0 // pred_check_branch
    %23 = sbr.rel (0) target = $region21
  $region20: #{dueling_dqn_forward.1} parent=0 // pred_region
    _
  $region21: #{dueling_dqn_forward.1} parent=0 // pred_fallthru
    _
  // Predicated region
  $region22: #{dueling_dqn_forward.1} parent=0 // pred_check
    _
  $region23: #{dueling_dqn_forward.1} parent=0 // pred_check_branch
    %25 = sbr.rel (0) target = $region25
  $region24: #{dueling_dqn_forward.1} parent=0 // pred_region
    _
  $region25: #{dueling_dqn_forward.1} parent=0 // pred_fallthru
    _
  // Predicated region
  $region26: #{dueling_dqn_forward.1} parent=0 // pred_check
    _
  $region27: #{dueling_dqn_forward.1} parent=0 // pred_check_branch
    %27 = sbr.rel (0) target = $region29
  $region28: #{dueling_dqn_forward.1} parent=0 // pred_region
    _
  $region29: #{dueling_dqn_forward.1} parent=0 // pred_fallthru
    _
  // Predicated region
  $region30: #{dueling_dqn_forward.1} parent=0 // pred_check
    _
  $region31: #{dueling_dqn_forward.1} parent=0 // pred_check_branch
    %29 = sbr.rel (0) target = $region33
  $region32: #{dueling_dqn_forward.1} parent=0 // pred_region
    _
  $region33: #{dueling_dqn_forward.1} parent=0 // pred_fallthru
    _
  // Predicated region
  $region34: #{dueling_dqn_forward.1} parent=0 // pred_check
    _
  $region35: #{dueling_dqn_forward.1} parent=0 // pred_check_branch
    %31 = sbr.rel (0) target = $region37
  $region36: #{dueling_dqn_forward.1} parent=0 // pred_region
    _
  $region37: #{dueling_dqn_forward.1} parent=0 // pred_fallthru
    _
  %v32 = vld [vmem:[%s0] sm:$0xff]
  %v33 = vld [vmem:[%s1] sm:$0xff]
  %v34 = vld [vmem:[%s1 + $0x8] sm:$0xff]
  %v35 = vld [vmem:[%s2] sm:$0x1]
  %v37 = vlaneseq
  %v38 = vshrl.u32 %v37, 7
  %v39 = vsub.s32 0, %v38
  %v40 = vrot.slane %v35, %v39
  %vm42 = vcmask 130048
  %v44 = vsel %vm42, %v32, 0
  %46 = vmatprep.subr.mxu0 0.0
  %47 = vmatpush1.msra.mxu0 0.0
  %48 = vmatprep.subr.mxu0 0.0
  %49 = vmatpush1.msra.mxu0 0.0
  %50 = vmatprep.subr.mxu0 0.0
  %51 = vmatpush1.msra.mxu0 0.0
  %52 = vmatprep.subr.mxu0 0.0
  %53 = vmatpush1.msra.mxu0 0.0
  %54 = vmatprep.subr.mxu0 0.0
  %55 = vmatpush1.msra.mxu0 0.0
  %56 = vmatprep.subr.mxu0 0.0
  %57 = vmatpush1.msra.mxu0 0.0
  %58 = vmatprep.subr.mxu0 0.0
  %59 = vmatpush1.msra.mxu0 0.0
  %60 = vmatprep.subr.mxu0 0.0
  %61 = vmatpush1.msra.mxu0 0.0
  %62 = vmatprep.subr.mxu0 0.0
  %63 = vmatpush1.msra.mxu0 0.0
  %64 = vmatprep.subr.mxu0 0.0
  %65 = vmatpush1.msra.mxu0 0.0
  %66 = vmatprep.subr.mxu0 0.0
  %67 = vmatpush1.msra.mxu0 0.0
  %68 = vmatprep.subr.mxu0 0.0
  %69 = vmatpush1.msra.mxu0 0.0
  %70 = vmatprep.subr.mxu0 0.0
  %71 = vmatpush1.msra.mxu0 0.0
  %72 = vmatprep.subr.mxu0 0.0
  %73 = vmatpush1.msra.mxu0 0.0
  %74 = vmatprep.subr.mxu0 0.0
  %75 = vmatpush1.msra.mxu0 %v34
  %76 = vmatprep.subr.mxu0 0.0
  %77 = vmatpush1.msra.mxu0 %v33
  %78 = vmatprep.subr.mxu0 0.0
  %79 = vmatpush2.msra.mxu0 0.0
  %80 = vmatprep.subr.mxu0 0.0
  %81 = vmatpush2.msra.mxu0 0.0
  %82 = vmatprep.subr.mxu0 0.0
  %83 = vmatpush2.msra.mxu0 0.0
  %84 = vmatprep.subr.mxu0 0.0
  %85 = vmatpush2.msra.mxu0 0.0
  %86 = vmatprep.subr.mxu0 0.0
  %87 = vmatpush2.msra.mxu0 0.0
  %88 = vmatprep.subr.mxu0 0.0
  %89 = vmatpush2.msra.mxu0 0.0
  %90 = vmatprep.subr.mxu0 0.0
  %91 = vmatpush2.msra.mxu0 0.0
  %92 = vmatprep.subr.mxu0 0.0
  %93 = vmatpush2.msra.mxu0 0.0
  %94 = vmatprep.subr.mxu0 0.0
  %95 = vmatpush2.msra.mxu0 0.0
  %96 = vmatprep.subr.mxu0 0.0
  %97 = vmatpush2.msra.mxu0 0.0
  %98 = vmatprep.subr.mxu0 0.0
  %99 = vmatpush2.msra.mxu0 0.0
  %100 = vmatprep.subr.mxu0 0.0
  %101 = vmatpush2.msra.mxu0 0.0
  %102 = vmatprep.subr.mxu0 0.0
  %103 = vmatpush2.msra.mxu0 0.0
  %104 = vmatprep.subr.mxu0 0.0
  %105 = vmatpush2.msra.mxu0 0.0
  %106 = vmatprep.subr.mxu0 0.0
  %107 = vmatpush2.msra.mxu0 0.0
  %108 = vmatprep.subr.mxu0 0.0
  %109 = vmatpush2.msra.mxu0 0.0
  %110 = vmatprep.mubr.f32.mxu0 0.0
  %111 = vmatmul.mubr.f32.gmra.mxu0 %v44
  %v112 = vpop.f32.mrf.mxu0
  %v113 = vadd.f32 %v40, %v112
  %v114 = vpop.f32.mrf.mxu0
  %115 = vdwg.mxu0
  %v116 = vmax.f32 %v113, 0.0
  %v117 = vld [vmem:[%s3] sm:$0xff]
  %v118 = vld [vmem:[%s3 + $0x8] sm:$0xff]
  %v119 = vld [vmem:[%s3 + $0x10] sm:$0xf]
  %v120 = vld [vmem:[%s4] sm:$0x1]
  %v122 = vlaneseq
  %v123 = vshrl.u32 %v122, 7
  %v124 = vsub.s32 0, %v123
  %v125 = vrot.slane %v120, %v124
  %vm127 = vcmask 162816
  %v129 = vsel %vm127, %v116, 0
  %vm131 = vcmask 1043456
  %v133 = vsel %vm131, %v119, 0
  %135 = vmatprep.subr.mxu0 0.0
  %136 = vmatpush1.msra.mxu0 0.0
  %137 = vmatprep.subr.mxu0 0.0
  %138 = vmatpush1.msra.mxu0 0.0
  %139 = vmatprep.subr.mxu0 0.0
  %140 = vmatpush1.msra.mxu0 0.0
  %141 = vmatprep.subr.mxu0 0.0
  %142 = vmatpush1.msra.mxu0 0.0
  %143 = vmatprep.subr.mxu0 0.0
  %144 = vmatpush1.msra.mxu0 0.0
  %145 = vmatprep.subr.mxu0 0.0
  %146 = vmatpush1.msra.mxu0 0.0
  %147 = vmatprep.subr.mxu0 0.0
  %148 = vmatpush1.msra.mxu0 0.0
  %149 = vmatprep.subr.mxu0 0.0
  %150 = vmatpush1.msra.mxu0 0.0
  %151 = vmatprep.subr.mxu0 0.0
  %152 = vmatpush1.msra.mxu0 0.0
  %153 = vmatprep.subr.mxu0 0.0
  %154 = vmatpush1.msra.mxu0 0.0
  %155 = vmatprep.subr.mxu0 0.0
  %156 = vmatpush1.msra.mxu0 0.0
  %157 = vmatprep.subr.mxu0 0.0
  %158 = vmatpush1.msra.mxu0 0.0
  %159 = vmatprep.subr.mxu0 0.0
  %160 = vmatpush1.msra.mxu0 0.0
  %161 = vmatprep.subr.mxu0 0.0
  %162 = vmatpush1.msra.mxu0 %v133
  %163 = vmatprep.subr.mxu0 0.0
  %164 = vmatpush1.msra.mxu0 %v118
  %165 = vmatprep.subr.mxu0 0.0
  %166 = vmatpush1.msra.mxu0 %v117
  %167 = vmatprep.subr.mxu0 0.0
  %168 = vmatpush2.msra.mxu0 0.0
  %169 = vmatprep.subr.mxu0 0.0
  %170 = vmatpush2.msra.mxu0 0.0
  %171 = vmatprep.subr.mxu0 0.0
  %172 = vmatpush2.msra.mxu0 0.0
  %173 = vmatprep.subr.mxu0 0.0
  %174 = vmatpush2.msra.mxu0 0.0
  %175 = vmatprep.subr.mxu0 0.0
  %176 = vmatpush2.msra.mxu0 0.0
  %177 = vmatprep.subr.mxu0 0.0
  %178 = vmatpush2.msra.mxu0 0.0
  %179 = vmatprep.subr.mxu0 0.0
  %180 = vmatpush2.msra.mxu0 0.0
  %181 = vmatprep.subr.mxu0 0.0
  %182 = vmatpush2.msra.mxu0 0.0
  %183 = vmatprep.subr.mxu0 0.0
  %184 = vmatpush2.msra.mxu0 0.0
  %185 = vmatprep.subr.mxu0 0.0
  %186 = vmatpush2.msra.mxu0 0.0
  %187 = vmatprep.subr.mxu0 0.0
  %188 = vmatpush2.msra.mxu0 0.0
  %189 = vmatprep.subr.mxu0 0.0
  %190 = vmatpush2.msra.mxu0 0.0
  %191 = vmatprep.subr.mxu0 0.0
  %192 = vmatpush2.msra.mxu0 0.0
  %193 = vmatprep.subr.mxu0 0.0
  %194 = vmatpush2.msra.mxu0 0.0
  %195 = vmatprep.subr.mxu0 0.0
  %196 = vmatpush2.msra.mxu0 0.0
  %197 = vmatprep.subr.mxu0 0.0
  %198 = vmatpush2.msra.mxu0 0.0
  %199 = vmatprep.mubr.f32.mxu0 0.0
  %200 = vmatmul.mubr.f32.gmra.mxu0 %v129
  %v201 = vpop.f32.mrf.mxu0
  %v202 = vadd.f32 %v125, %v201
  %v203 = vpop.f32.mrf.mxu0
  %204 = vdwg.mxu0
  %v205 = vmax.f32 %v202, 0.0
  %v206 = vld [vmem:[%s5] sm:$0xff]
  %v207 = vld [vmem:[%s5 + $0x8] sm:$0x7f]
  %v208 = vld [vmem:[%s6] sm:$0x1]
  %v210 = vlaneseq
  %v211 = vshrl.u32 %v210, 7
  %v212 = vsub.s32 0, %v211
  %v213 = vrot.slane %v208, %v212
  %vm215 = vcmask 121856
  %v217 = vsel %vm215, %v205, 0
  %vm219 = vcmask 1046528
  %v221 = vsel %vm219, %v207, 0
  %223 = vmatprep.subr.mxu0 0.0
  %224 = vmatpush1.msra.mxu0 0.0
  %225 = vmatprep.subr.mxu0 0.0
  %226 = vmatpush1.msra.mxu0 0.0
  %227 = vmatprep.subr.mxu0 0.0
  %228 = vmatpush1.msra.mxu0 0.0
  %229 = vmatprep.subr.mxu0 0.0
  %230 = vmatpush1.msra.mxu0 0.0
  %231 = vmatprep.subr.mxu0 0.0
  %232 = vmatpush1.msra.mxu0 0.0
  %233 = vmatprep.subr.mxu0 0.0
  %234 = vmatpush1.msra.mxu0 0.0
  %235 = vmatprep.subr.mxu0 0.0
  %236 = vmatpush1.msra.mxu0 0.0
  %237 = vmatprep.subr.mxu0 0.0
  %238 = vmatpush1.msra.mxu0 0.0
  %239 = vmatprep.subr.mxu0 0.0
  %240 = vmatpush1.msra.mxu0 0.0
  %241 = vmatprep.subr.mxu0 0.0
  %242 = vmatpush1.msra.mxu0 0.0
  %243 = vmatprep.subr.mxu0 0.0
  %244 = vmatpush1.msra.mxu0 0.0
  %245 = vmatprep.subr.mxu0 0.0
  %246 = vmatpush1.msra.mxu0 0.0
  %247 = vmatprep.subr.mxu0 0.0
  %248 = vmatpush1.msra.mxu0 0.0
  %249 = vmatprep.subr.mxu0 0.0
  %250 = vmatpush1.msra.mxu0 0.0
  %251 = vmatprep.subr.mxu0 0.0
  %252 = vmatpush1.msra.mxu0 %v221
  %253 = vmatprep.subr.mxu0 0.0
  %254 = vmatpush1.msra.mxu0 %v206
  %255 = vmatprep.subr.mxu0 0.0
  %256 = vmatpush2.msra.mxu0 0.0
  %257 = vmatprep.subr.mxu0 0.0
  %258 = vmatpush2.msra.mxu0 0.0
  %259 = vmatprep.subr.mxu0 0.0
  %260 = vmatpush2.msra.mxu0 0.0
  %261 = vmatprep.subr.mxu0 0.0
  %262 = vmatpush2.msra.mxu0 0.0
  %263 = vmatprep.subr.mxu0 0.0
  %264 = vmatpush2.msra.mxu0 0.0
  %265 = vmatprep.subr.mxu0 0.0
  %266 = vmatpush2.msra.mxu0 0.0
  %267 = vmatprep.subr.mxu0 0.0
  %268 = vmatpush2.msra.mxu0 0.0
  %269 = vmatprep.subr.mxu0 0.0
  %270 = vmatpush2.msra.mxu0 0.0
  %271 = vmatprep.subr.mxu0 0.0
  %272 = vmatpush2.msra.mxu0 0.0
  %273 = vmatprep.subr.mxu0 0.0
  %274 = vmatpush2.msra.mxu0 0.0
  %275 = vmatprep.subr.mxu0 0.0
  %276 = vmatpush2.msra.mxu0 0.0
  %277 = vmatprep.subr.mxu0 0.0
  %278 = vmatpush2.msra.mxu0 0.0
  %279 = vmatprep.subr.mxu0 0.0
  %280 = vmatpush2.msra.mxu0 0.0
  %281 = vmatprep.subr.mxu0 0.0
  %282 = vmatpush2.msra.mxu0 0.0
  %283 = vmatprep.subr.mxu0 0.0
  %284 = vmatpush2.msra.mxu0 0.0
  %285 = vmatprep.subr.mxu0 0.0
  %286 = vmatpush2.msra.mxu0 0.0
  %287 = vmatprep.mubr.f32.mxu0 0.0
  %288 = vmatmul.mubr.f32.gmra.mxu0 %v217
  %v289 = vpop.f32.mrf.mxu0
  %v290 = vadd.f32 %v213, %v289
  %v291 = vpop.f32.mrf.mxu0
  %292 = vdwg.mxu0
  %v293 = vmax.f32 %v290, 0.0
  %v294 = vld [vmem:[%s7] sm:$0xff]
  %v295 = vld [vmem:[%s7 + $0x8] sm:$0xff]
  %v296 = vld [vmem:[%s7 + $0x10] sm:$0xff]
  %v297 = vld [vmem:[%s7 + $0x18] sm:$0x3f]
  %v298 = vld [vmem:[%s8] sm:$0x1]
  %v300 = vlaneseq
  %v301 = vshrl.u32 %v300, 7
  %v302 = vsub.s32 0, %v301
  %v303 = vrot.slane %v298, %v302
  %vm305 = vcmask 244736
  %v307 = vsel %vm305, %v293, 0
  %vm309 = vcmask 1045504
  %v311 = vsel %vm309, %v297, 0
  %313 = vmatprep.subr.mxu0 0.0
  %314 = vmatpush1.msra.mxu0 0.0
  %315 = vmatprep.subr.mxu0 0.0
  %316 = vmatpush1.msra.mxu0 0.0
  %317 = vmatprep.subr.mxu0 0.0
  %318 = vmatpush1.msra.mxu0 0.0
  %319 = vmatprep.subr.mxu0 0.0
  %320 = vmatpush1.msra.mxu0 0.0
  %321 = vmatprep.subr.mxu0 0.0
  %322 = vmatpush1.msra.mxu0 0.0
  %323 = vmatprep.subr.mxu0 0.0
  %324 = vmatpush1.msra.mxu0 0.0
  %325 = vmatprep.subr.mxu0 0.0
  %326 = vmatpush1.msra.mxu0 0.0
  %327 = vmatprep.subr.mxu0 0.0
  %328 = vmatpush1.msra.mxu0 0.0
  %329 = vmatprep.subr.mxu0 0.0
  %330 = vmatpush1.msra.mxu0 0.0
  %331 = vmatprep.subr.mxu0 0.0
  %332 = vmatpush1.msra.mxu0 0.0
  %333 = vmatprep.subr.mxu0 0.0
  %334 = vmatpush1.msra.mxu0 0.0
  %335 = vmatprep.subr.mxu0 0.0
  %336 = vmatpush1.msra.mxu0 0.0
  %337 = vmatprep.subr.mxu0 0.0
  %338 = vmatpush1.msra.mxu0 %v311
  %339 = vmatprep.subr.mxu0 0.0
  %340 = vmatpush1.msra.mxu0 %v296
  %341 = vmatprep.subr.mxu0 0.0
  %342 = vmatpush1.msra.mxu0 %v295
  %343 = vmatprep.subr.mxu0 0.0
  %344 = vmatpush1.msra.mxu0 %v294
  %345 = vmatprep.subr.mxu0 0.0
  %346 = vmatpush2.msra.mxu0 0.0
  %347 = vmatprep.subr.mxu0 0.0
  %348 = vmatpush2.msra.mxu0 0.0
  %349 = vmatprep.subr.mxu0 0.0
  %350 = vmatpush2.msra.mxu0 0.0
  %351 = vmatprep.subr.mxu0 0.0
  %352 = vmatpush2.msra.mxu0 0.0
  %353 = vmatprep.subr.mxu0 0.0
  %354 = vmatpush2.msra.mxu0 0.0
  %355 = vmatprep.subr.mxu0 0.0
  %356 = vmatpush2.msra.mxu0 0.0
  %357 = vmatprep.subr.mxu0 0.0
  %358 = vmatpush2.msra.mxu0 0.0
  %359 = vmatprep.subr.mxu0 0.0
  %360 = vmatpush2.msra.mxu0 0.0
  %361 = vmatprep.subr.mxu0 0.0
  %362 = vmatpush2.msra.mxu0 0.0
  %363 = vmatprep.subr.mxu0 0.0
  %364 = vmatpush2.msra.mxu0 0.0
  %365 = vmatprep.subr.mxu0 0.0
  %366 = vmatpush2.msra.mxu0 0.0
  %367 = vmatprep.subr.mxu0 0.0
  %368 = vmatpush2.msra.mxu0 0.0
  %369 = vmatprep.subr.mxu0 0.0
  %370 = vmatpush2.msra.mxu0 0.0
  %371 = vmatprep.subr.mxu0 0.0
  %372 = vmatpush2.msra.mxu0 0.0
  %373 = vmatprep.subr.mxu0 0.0
  %374 = vmatpush2.msra.mxu0 0.0
  %375 = vmatprep.subr.mxu0 0.0
  %376 = vmatpush2.msra.mxu0 0.0
  %377 = vmatprep.mubr.f32.mxu0 0.0
  %378 = vmatmul.mubr.f32.gmra.mxu0 %v307
  %v379 = vpop.f32.mrf.mxu0
  %v380 = vadd.f32 %v303, %v379
  %v381 = vpop.f32.mrf.mxu0
  %382 = vdwg.mxu0
  %vm383 = vcmask 64512
  %384 = vst.msk [vmem:[%s9] sm:$0xff] %vm383, %v380
  // Predicated region
  $region38: #{dueling_dqn_forward.1} parent=0 // pred_check
    _
  $region39: #{dueling_dqn_forward.1} parent=0 // pred_check_branch
    %386 = sbr.rel (0) target = $region41
  $region40: #{dueling_dqn_forward.1} parent=0 // pred_region
    _
  $region41: #{dueling_dqn_forward.1} parent=0 // pred_fallthru
    _
  // Predicated region
  $region42: #{dueling_dqn_forward.1} parent=0 // pred_check
    _
  $region43: #{dueling_dqn_forward.1} parent=0 // pred_check_branch
    %388 = sbr.rel (0) target = $region45
  $region44: #{dueling_dqn_forward.1} parent=0 // pred_region
    _
  $region45: #{dueling_dqn_forward.1} parent=0 // pred_fallthru
    _

</llo_original>
